<compile_context>
chip_gen: v6e
topology: v6e:2x2x1
jax: 0.10.0
libtpu: 0.0.40
codegen_flags: <defaults>
</compile_context>

<pallas_src>
import functools

import jax
import jax.numpy as jnp
from jax.experimental import pallas as pl
from jax.experimental.pallas import tpu as pltpu


def _round_up(n, m):
    return ((n + m - 1) // m) * m


def _pick_tile(padded_dim, target):
    """Largest multiple of 128 dividing padded_dim (itself a multiple of 128), <= target."""
    t = min(target, padded_dim)
    t = max((t // 128) * 128, 128)
    while padded_dim % t != 0:
        t -= 128
    return t


def block_kernel(xv_ref, xg_ref, lap_ref, su_w_ref, bias_ref, out_ref):
    """f32-output variant: accumulate directly into the (k-resident) out block."""
    k = pl.program_id(1)

    # k == 0: initialize with the fused S/U projection + combined bias.
    @pl.when(k == 0)
    def _():
        out_ref[...] = (
            jnp.dot(xv_ref[...], su_w_ref[...], preferred_element_type=jnp.float32)
            + bias_ref[...]
        )

    # G term (reassociated): out[i] += lap^2[i, k-tile] @ xg[k-tile].
    lap = lap_ref[...].astype(jnp.float32)
    lap2 = (lap * lap).astype(xg_ref.dtype)           # square in f32, MXU in xg dtype
    out_ref[...] += jnp.dot(lap2, xg_ref[...], preferred_element_type=jnp.float32)


def block_kernel_scratch(xv_ref, xg_ref, lap_ref, su_w_ref, bias_ref, out_ref, acc_ref):
    """Scratch-accumulator variant for non-f32 output dtypes."""
    k = pl.program_id(1)

    @pl.when(k == 0)
    def _():
        acc_ref[...] = (
            jnp.dot(xv_ref[...], su_w_ref[...], preferred_element_type=jnp.float32)
            + bias_ref[...]
        )

    lap = lap_ref[...].astype(jnp.float32)
    lap2 = (lap * lap).astype(xg_ref.dtype)
    acc_ref[...] += jnp.dot(lap2, xg_ref[...], preferred_element_type=jnp.float32)

    @pl.when(k == pl.num_programs(1) - 1)
    def _():
        out_ref[...] = acc_ref[...].astype(out_ref.dtype)


def block_forward(x, lap, view, params, gamma, *, tm=1024, tk=1024, lap_bf16=True):
    """Pallas implementation of Block.forward.

    x:    [N, F]   lap: [N, N]   view: [N, nfea]
    params: S_w [F,F], S_b [F], U_w [F,nfea], U_b [F], G_w [F,F], G_b [F]
            (PyTorch nn.Linear layout: weight is [out, in]).
    lap_bf16: cast lap / xg to bf16 at the HBM side (halves the dominant DMA
              stream; f32 accumulation).  Relative error grows ~sqrt(N)*2^-8.
    """
    N, F = x.shape
    nfea = view.shape[1]
    assert lap.shape == (N, N)
    out_dtype = x.dtype

    gamma = jnp.asarray(gamma, jnp.float32)            # traceable (no Python float())

    # Pad N up to a multiple of 128 with zero rows/cols (zeros are inert in
    # every term; padded output rows are sliced off below).
    Np = _round_up(max(N, 128), 128)
    pad = Np - N
    if pad:
        x = jnp.pad(x, ((0, pad), (0, 0)))
        view = jnp.pad(view, ((0, pad), (0, 0)))
        lap = jnp.pad(lap, ((0, pad), (0, pad)))

    # Wrapper-side constant folding (glue, runs once under jit):
    #   su_w = [[S_w^T], [U_w^T]]  -> [x|view] @ su_w == x@S^T + view@U^T
    #   bias = S_b + U_b - gamma * G_b (single combined row)
    #   xg   = x @ (-gamma * G_w^T)  (tiny [Np,F]@[F,F] matmul, done once)
    su_w = jnp.concatenate([params["S_w"].T, params["U_w"].T], axis=0).astype(jnp.float32)
    bias = (params["S_b"] + params["U_b"] - gamma * params["G_b"]).reshape(1, F)
    bias = bias.astype(jnp.float32)
    g_w = (-gamma) * params["G_w"].T.astype(jnp.float32)                 # (F, F)
    xg = x.astype(jnp.float32) @ g_w                                     # (Np, F)
    xv = jnp.concatenate([x, view], axis=1).astype(jnp.float32)          # (Np, F+nfea)

    if lap_bf16:
        lap = lap.astype(jnp.bfloat16)   # dominant stream DMA'd at 2 B/elem
        xg = xg.astype(jnp.bfloat16)

    # Tile selection: multiples of 128, dividing Np.  Cap tm so the row axis
    # has >= 2 blocks (v7x megacore); VMEM stays well under 32 MiB at 1024
    # tiles even counting the f32 lap^2 temporary.
    tm_target = min(tm, Np // 2) if Np >= 256 else tm
    tm_sel = _pick_tile(Np, tm_target)
    tk_sel = _pick_tile(Np, tk)
    grid = (Np // tm_sel, Np // tk_sel)

    in_specs = [
        pl.BlockSpec((tm_sel, F + nfea), lambda i, k: (i, 0)),   # xv row tile
        pl.BlockSpec((tk_sel, F),        lambda i, k: (k, 0)),   # xg contraction rows
        pl.BlockSpec((tm_sel, tk_sel),   lambda i, k: (i, k)),   # lap tile (dominant)
        pl.BlockSpec((F + nfea, F),      lambda i, k: (0, 0)),   # su_w (VMEM-resident)
        pl.BlockSpec((1, F),             lambda i, k: (0, 0)),   # bias (VMEM-resident)
    ]
    out_specs = pl.BlockSpec((tm_sel, F), lambda i, k: (i, 0))

    if out_dtype == jnp.float32:
        kernel = block_kernel
        scratch_shapes = []
    else:
        kernel = block_kernel_scratch
        scratch_shapes = [pltpu.VMEM((tm_sel, F), jnp.float32)]

    out = pl.pallas_call(
        kernel,
        out_shape=jax.ShapeDtypeStruct((Np, F), out_dtype),
        grid_spec=pltpu.PrefetchScalarGridSpec(
            num_scalar_prefetch=0,
            grid=grid,
            in_specs=in_specs,
            out_specs=out_specs,
            scratch_shapes=scratch_shapes,
        ),
        compiler_params=pltpu.CompilerParams(
            dimension_semantics=("parallel", "arbitrary"),
            vmem_limit_bytes=32 * 1024 * 1024,
        ),
    )(xv, xg, lap, su_w, bias)

    return out[:N] if pad else out


def reference_forward(x, lap, view, params, gamma):
    input1 = x @ params["S_w"].T + params["S_b"]
    input2 = view @ params["U_w"].T + params["U_b"]
    lap2 = lap * lap
    out = lap2 @ x
    out = out @ params["G_w"].T + params["G_b"]
    return input1 + input2 - gamma * out


if __name__ == "__main__":
    out_features = 32
    nfea = 16
    gamma = 0.5

    key = jax.random.PRNGKey(0)
    keys = jax.random.split(key, 9)

    params = {
        "S_w": jax.random.normal(keys[3], (out_features, out_features), jnp.float32) * 0.1,
        "S_b": jax.random.normal(keys[4], (out_features,), jnp.float32) * 0.1,
        "U_w": jax.random.normal(keys[5], (out_features, nfea), jnp.float32) * 0.1,
        "U_b": jax.random.normal(keys[6], (out_features,), jnp.float32) * 0.1,
        "G_w": jax.random.normal(keys[7], (out_features, out_features), jnp.float32) * 0.1,
        "G_b": jax.random.normal(keys[8], (out_features,), jnp.float32) * 0.1,
    }

    # Case 1: N multiple of 128 (exercises the 2-D grid + row-parallel split).
    N = 256
    x = jax.random.normal(keys[0], (N, out_features), dtype=jnp.float32)
    lap = jax.random.normal(keys[1], (N, N), dtype=jnp.float32)
    view = jax.random.normal(keys[2], (N, nfea), dtype=jnp.float32)
    ref = reference_forward(x, lap, view, params, gamma)

    # f32 streaming path (tight tolerance).
    out = block_forward(x, lap, view, params, gamma, lap_bf16=False)
    out = jax.block_until_ready(out)
    assert out.shape == (N, out_features)
    assert jnp.allclose(out, ref, atol=2e-3, rtol=2e-3), "f32 path mismatch vs reference"

    # Default bf16-lap path (half the HBM traffic; f32 accumulation).
    out_bf16 = block_forward(x, lap, view, params, gamma, lap_bf16=True)
    out_bf16 = jax.block_until_ready(out_bf16)
    assert jnp.allclose(out_bf16, ref, atol=5e-1, rtol=5e-2), "bf16 path mismatch vs reference"

    # Case 2: N NOT a multiple of 128 -> exercises zero-padding path.
    N2 = 200
    x2 = jax.random.normal(keys[0], (N2, out_features), dtype=jnp.float32)
    lap2 = jax.random.normal(keys[1], (N2, N2), dtype=jnp.float32)
    view2 = jax.random.normal(keys[2], (N2, nfea), dtype=jnp.float32)
    ref2 = reference_forward(x2, lap2, view2, params, gamma)
    out2 = block_forward(x2, lap2, view2, params, gamma, lap_bf16=False)
    out2 = jax.block_until_ready(out2)
    assert out2.shape == (N2, out_features)
    assert jnp.allclose(out2, ref2, atol=2e-3, rtol=2e-3), "padded path mismatch vs reference"

    print("KERNEL_OK")
</pallas_src>

<mosaic_0001>
module attributes {stable_mosaic.version = 11 : i64} {
  func.func @block_kernel(%arg0: i32, %arg1: i32, %arg2: memref<128x48xf32, #tpu.memory_space<vmem>>, %arg3: memref<256x32xf32, #tpu.memory_space<vmem>>, %arg4: memref<128x256xf32, #tpu.memory_space<vmem>>, %arg5: memref<48x32xf32, #tpu.memory_space<vmem>>, %arg6: memref<1x32xf32, #tpu.memory_space<vmem>>, %arg7: memref<128x32xf32, #tpu.memory_space<vmem>>) attributes {dimension_semantics = [#tpu.dimension_semantics<parallel>, #tpu.dimension_semantics<arbitrary>], iteration_bounds = array<i64: 2, 1>, scalar_prefetch = 0 : i64, scratch_operands = 0 : i64, tpu.core_type = #tpu.core_type<tc>, window_params = [{transform_indices = @transform_0, window_bounds = array<i64: 128, 48>}, {transform_indices = @transform_1, window_bounds = array<i64: 256, 32>}, {transform_indices = @transform_2, window_bounds = array<i64: 128, 256>}, {pipeline_mode = #tpu.pipeline_mode<synchronous>, transform_indices = @transform_3, window_bounds = array<i64: 48, 32>}, {pipeline_mode = #tpu.pipeline_mode<synchronous>, transform_indices = @transform_4, window_bounds = array<i64: 1, 32>}, {transform_indices = @transform_5, window_bounds = array<i64: 128, 32>}]} {
    %c0_i32 = arith.constant 0 : i32
    %0 = arith.cmpi eq, %arg1, %c0_i32 : i32
    %1 = arith.extui %0 : i1 to i32
    %c0_i32_0 = arith.constant 0 : i32
    %2 = arith.cmpi ne, %1, %c0_i32_0 : i32
    scf.if %2 {
      %c0_8 = arith.constant 0 : index
      %c0_9 = arith.constant 0 : index
      %10 = vector.load %arg2[%c0_8, %c0_9] : memref<128x48xf32, #tpu.memory_space<vmem>>, vector<128x48xf32>
      %c0_10 = arith.constant 0 : index
      %c0_11 = arith.constant 0 : index
      %11 = vector.load %arg5[%c0_10, %c0_11] : memref<48x32xf32, #tpu.memory_space<vmem>>, vector<48x32xf32>
      %cst_12 = arith.constant dense<0.000000e+00> : vector<128x32xf32>
      %12 = tpu.matmul %10, %11, %cst_12 {dimension_numbers = #tpu.dot_dimension_numbers<[1], [0], [0], [1], [0, 0, 1, 1], [], []>} : vector<128x48xf32>, vector<48x32xf32>, vector<128x32xf32> -> vector<128x32xf32>
      %c0_13 = arith.constant 0 : index
      %c0_14 = arith.constant 0 : index
      %13 = vector.load %arg6[%c0_13, %c0_14] : memref<1x32xf32, #tpu.memory_space<vmem>>, vector<1x32xf32>
      %14 = vector.broadcast %13 : vector<1x32xf32> to vector<128x32xf32>
      %15 = arith.addf %12, %14 : vector<128x32xf32>
      %c0_15 = arith.constant 0 : index
      %c0_16 = arith.constant 0 : index
      %16 = vector.load %arg7[%c0_15, %c0_16] : memref<128x32xf32, #tpu.memory_space<vmem>>, vector<128x32xf32>
      tpu.vector_store %arg7[%c0_15, %c0_16], %15 {strides = array<i32>} : memref<128x32xf32, #tpu.memory_space<vmem>>, vector<128x32xf32>,
    } else {
    }
    %c0 = arith.constant 0 : index
    %c0_1 = arith.constant 0 : index
    %3 = vector.load %arg4[%c0, %c0_1] : memref<128x256xf32, #tpu.memory_space<vmem>>, vector<128x256xf32>
    %4 = arith.mulf %3, %3 : vector<128x256xf32>
    %c0_2 = arith.constant 0 : index
    %c0_3 = arith.constant 0 : index
    %5 = vector.load %arg7[%c0_2, %c0_3] : memref<128x32xf32, #tpu.memory_space<vmem>>, vector<128x32xf32>
    %c0_4 = arith.constant 0 : index
    %c0_5 = arith.constant 0 : index
    %6 = vector.load %arg3[%c0_4, %c0_5] : memref<256x32xf32, #tpu.memory_space<vmem>>, vector<256x32xf32>
    %cst = arith.constant dense<0.000000e+00> : vector<128x32xf32>
    %7 = tpu.matmul %4, %6, %cst {dimension_numbers = #tpu.dot_dimension_numbers<[1], [0], [0], [1], [0, 0, 1, 1], [], []>} : vector<128x256xf32>, vector<256x32xf32>, vector<128x32xf32> -> vector<128x32xf32>
    %8 = arith.addf %5, %7 : vector<128x32xf32>
    %c0_6 = arith.constant 0 : index
    %c0_7 = arith.constant 0 : index
    %9 = vector.load %arg7[%c0_6, %c0_7] : memref<128x32xf32, #tpu.memory_space<vmem>>, vector<128x32xf32>
    tpu.vector_store %arg7[%c0_6, %c0_7], %8 {strides = array<i32>} : memref<128x32xf32, #tpu.memory_space<vmem>>, vector<128x32xf32>,
    return
  }
  func.func @transform_0(%arg0: i32, %arg1: i32) -> (i32, i32) {
    %c0_i32 = arith.constant 0 : i32
    %c0_i32_0 = arith.constant 0 : i32
    return %arg0, %c0_i32 : i32, i32
  }
  func.func @transform_1(%arg0: i32, %arg1: i32) -> (i32, i32) {
    %c0_i32 = arith.constant 0 : i32
    %c0_i32_0 = arith.constant 0 : i32
    return %arg1, %c0_i32 : i32, i32
  }
  func.func @transform_2(%arg0: i32, %arg1: i32) -> (i32, i32) {
    %c0_i32 = arith.constant 0 : i32
    return %arg0, %arg1 : i32, i32
  }
  func.func @transform_3(%arg0: i32, %arg1: i32) -> (i32, i32) {
    %c0_i32 = arith.constant 0 : i32
    %c0_i32_0 = arith.constant 0 : i32
    %c0_i32_1 = arith.constant 0 : i32
    return %c0_i32, %c0_i32_0 : i32, i32
  }
  func.func @transform_4(%arg0: i32, %arg1: i32) -> (i32, i32) {
    %c0_i32 = arith.constant 0 : i32
    %c0_i32_0 = arith.constant 0 : i32
    %c0_i32_1 = arith.constant 0 : i32
    return %c0_i32, %c0_i32_0 : i32, i32
  }
  func.func @transform_5(%arg0: i32, %arg1: i32) -> (i32, i32) {
    %c0_i32 = arith.constant 0 : i32
    %c0_i32_0 = arith.constant 0 : i32
    return %arg0, %c0_i32 : i32, i32
  }
}

</mosaic_0001>

<llo_original>
// kernel: tpu_custom_call.1
$region0: #{tpu_custom_call.1}
  #allocation0 [shape = 'u32[]', space=smem, size = 0x4, offset = 0x4, fixed_abs, tag = 'smem constant byte address 0x4 - core index']
  #allocation1 [shape = 'u32[144,128]{1,0:T(1,128)}', space=vmem, size = 0x12000, scoped, tag = 'internal scratch']
  %s0 = inlined_call_operand.vmem [shape: f32[256,48], index: 0, kind: input, shape index: {}]
  %s1 = inlined_call_operand.vmem [shape: f32[256,32], index: 1, kind: input, shape index: {}]
  %s2 = inlined_call_operand.vmem [shape: f32[256,256], index: 2, kind: input, shape index: {}]
  %s3 = inlined_call_operand.vmem [shape: f32[48,32], index: 3, kind: input, shape index: {}]
  %s4 = inlined_call_operand.vmem [shape: f32[1,32], index: 4, kind: input, shape index: {}]
  %s5 = inlined_call_operand.vmem [shape: f32[256,32], index: 5, kind: output, shape index: {}]
  %s6 = sld [smem:[#allocation0]]
  $region57: #{tpu_custom_call.1} parent=0
    _
  %s8 = ssub.s32 1, %s6
  %s9 = scalar_select 0, %s8, %s6
  loop: start=0, step=1, limit=4
  $region2: #{tpu_custom_call.1} parent=0 // loop_pre_header
    _
  $region3: #{tpu_custom_call.1} parent=0 // loop_header
    %s11 = sphi 0, %s15
    %p12 = scmp.ge.s32.totalorder %s11, 4
    %s18 = sphi 0, %s30
    %s19 = sphi 0, %s26
    %s20 = sphi 0, %s18
    %s21 = sphi 0, %s19
    %s22 = sphi 0, %s20
    %s23 = sphi 0, %s21
    %s33 = sphi 0, %s35
    %s36 = sphi 0, %s33
    %s37 = sphi 0, %s36
    %s53 = sphi 0, %s37
    %s59 = sphi 0, %s61
    %s62 = sphi 0, %s59
    %s63 = sphi 0, %s62
    %s79 = sphi 0, %s63
    %s87 = sphi 0, %s89
    %s90 = sphi 0, %s87
    %s91 = sphi 0, %s90
    %s107 = sphi 0, %s91
    %s111 = sphi 0, %s111
    %s113 = sphi 0, %s111
    %s114 = sphi 0, %s113
    %s128 = sphi 0, %s114
    %s132 = sphi 0, %s132
    %s134 = sphi 0, %s132
    %s135 = sphi 0, %s134
    %s149 = sphi 0, %s135
    %s155 = sphi 0, %s157
    %s158 = sphi 0, %s155
    %s159 = sphi 0, %s158
    %s175 = sphi 0, %s159
  $region4: #{tpu_custom_call.1} parent=0 // loop_header_branch
    %14 = sbr.rel (%p12) target = $region8
  $region5: #{tpu_custom_call.1} parent=0 // loop_body
    %s16 = ssub.s32 %s11, 1
    %s17 = ssub.s32 %s11, 2
    %s24 = sadd.s32 1, %s19
    %p25 = scmp.ge.s32.totalorder %s24, 1
    %s26 = scalar_select %p25, 0, %s24
    %s27 = sadd.s32 1, %s18
    %s28 = scalar_select %p25, %s27, %s18
    %p29 = scmp.ge.s32.totalorder %s28, 2
    %s30 = scalar_select %p29, 0, %s28
    %s31 = ssub.s32 %s18, %s30
    %p32 = scmp.eq.s32.totalorder %s31, 0
    %s34 = sadd.s32 %s33, 1
    %s35 = scalar_select %p32, %s33, %s34
    %p38 = pneg %p32
    %p39 = scmp.eq.s32.totalorder %s11, 1
    %p40 = por %p38, %p39
    %p41 = scmp.ne.s32.totalorder %s33, %s36
    %p42 = scmp.eq.s32.totalorder %s11, 0
    %p43 = por %p41, %p42
    %p44 = scmp.ne.s32.totalorder %s33, %s36
    %p45 = scmp.eq.s32.totalorder %s16, 1
    %p46 = por %p44, %p45
    %p47 = scmp.ne.s32.totalorder %s36, %s37
    %p48 = scmp.eq.s32.totalorder %s16, 0
    %p49 = por %p47, %p48
    %p50 = scmp.ne.s32.totalorder %s36, %s37
    %p51 = scmp.eq.s32.totalorder %s17, 1
    %p52 = por %p50, %p51
    %p54 = scmp.ne.s32.totalorder %s37, %s53
    %p55 = scmp.eq.s32.totalorder %s17, 0
    %p56 = por %p54, %p55
    %s57 = ssub.s32 %s19, %s26
    %p58 = scmp.eq.s32.totalorder %s57, 0
    %s60 = sadd.s32 %s59, 1
    %s61 = scalar_select %p58, %s59, %s60
    %p64 = pneg %p58
    %p65 = scmp.eq.s32.totalorder %s11, 1
    %p66 = por %p64, %p65
    %p67 = scmp.ne.s32.totalorder %s59, %s62
    %p68 = scmp.eq.s32.totalorder %s11, 0
    %p69 = por %p67, %p68
    %p70 = scmp.ne.s32.totalorder %s59, %s62
    %p71 = scmp.eq.s32.totalorder %s16, 1
    %p72 = por %p70, %p71
    %p73 = scmp.ne.s32.totalorder %s62, %s63
    %p74 = scmp.eq.s32.totalorder %s16, 0
    %p75 = por %p73, %p74
    %p76 = scmp.ne.s32.totalorder %s62, %s63
    %p77 = scmp.eq.s32.totalorder %s17, 1
    %p78 = por %p76, %p77
    %p80 = scmp.ne.s32.totalorder %s63, %s79
    %p81 = scmp.eq.s32.totalorder %s17, 0
    %p82 = por %p80, %p81
    %s83 = ssub.s32 %s18, %s30
    %s84 = ssub.s32 %s19, %s26
    %s85 = sor.u32 %s83, %s84
    %p86 = scmp.eq.s32.totalorder %s85, 0
    %s88 = sadd.s32 %s87, 1
    %s89 = scalar_select %p86, %s87, %s88
    %p92 = pneg %p86
    %p93 = scmp.eq.s32.totalorder %s11, 1
    %p94 = por %p92, %p93
    %p95 = scmp.ne.s32.totalorder %s87, %s90
    %p96 = scmp.eq.s32.totalorder %s11, 0
    %p97 = por %p95, %p96
    %p98 = scmp.ne.s32.totalorder %s87, %s90
    %p99 = scmp.eq.s32.totalorder %s16, 1
    %p100 = por %p98, %p99
    %p101 = scmp.ne.s32.totalorder %s90, %s91
    %p102 = scmp.eq.s32.totalorder %s16, 0
    %p103 = por %p101, %p102
    %p104 = scmp.ne.s32.totalorder %s90, %s91
    %p105 = scmp.eq.s32.totalorder %s17, 1
    %p106 = por %p104, %p105
    %p108 = scmp.ne.s32.totalorder %s91, %s107
    %p109 = scmp.eq.s32.totalorder %s17, 0
    %p110 = por %p108, %p109
    %s112 = sadd.s32 %s111, 1
    %p115 = scmp.eq.s32.totalorder %s11, 1
    %p116 = scmp.ne.s32.totalorder %s111, %s113
    %p117 = scmp.eq.s32.totalorder %s11, 0
    %p118 = por %p116, %p117
    %p119 = scmp.ne.s32.totalorder %s111, %s113
    %p120 = scmp.eq.s32.totalorder %s16, 1
    %p121 = por %p119, %p120
    %p122 = scmp.ne.s32.totalorder %s113, %s114
    %p123 = scmp.eq.s32.totalorder %s16, 0
    %p124 = por %p122, %p123
    %p125 = scmp.ne.s32.totalorder %s113, %s114
    %p126 = scmp.eq.s32.totalorder %s17, 1
    %p127 = por %p125, %p126
    %p129 = scmp.ne.s32.totalorder %s114, %s128
    %p130 = scmp.eq.s32.totalorder %s17, 0
    %p131 = por %p129, %p130
    %s133 = sadd.s32 %s132, 1
    %p136 = scmp.eq.s32.totalorder %s11, 1
    %p137 = scmp.ne.s32.totalorder %s132, %s134
    %p138 = scmp.eq.s32.totalorder %s11, 0
    %p139 = por %p137, %p138
    %p140 = scmp.ne.s32.totalorder %s132, %s134
    %p141 = scmp.eq.s32.totalorder %s16, 1
    %p142 = por %p140, %p141
    %p143 = scmp.ne.s32.totalorder %s134, %s135
    %p144 = scmp.eq.s32.totalorder %s16, 0
    %p145 = por %p143, %p144
    %p146 = scmp.ne.s32.totalorder %s134, %s135
    %p147 = scmp.eq.s32.totalorder %s17, 1
    %p148 = por %p146, %p147
    %p150 = scmp.ne.s32.totalorder %s135, %s149
    %p151 = scmp.eq.s32.totalorder %s17, 0
    %p152 = por %p150, %p151
    %s153 = ssub.s32 %s18, %s30
    %p154 = scmp.eq.s32.totalorder %s153, 0
    %s156 = sadd.s32 %s155, 1
    %s157 = scalar_select %p154, %s155, %s156
    %p160 = pneg %p154
    %p161 = scmp.eq.s32.totalorder %s11, 1
    %p162 = por %p160, %p161
    %p163 = scmp.ne.s32.totalorder %s155, %s158
    %p164 = scmp.eq.s32.totalorder %s11, 0
    %p165 = por %p163, %p164
    %p166 = scmp.ne.s32.totalorder %s155, %s158
    %p167 = scmp.eq.s32.totalorder %s16, 1
    %p168 = por %p166, %p167
    %p169 = scmp.ne.s32.totalorder %s158, %s159
    %p170 = scmp.eq.s32.totalorder %s16, 0
    %p171 = por %p169, %p170
    %p172 = scmp.ne.s32.totalorder %s158, %s159
    %p173 = scmp.eq.s32.totalorder %s17, 1
    %p174 = por %p172, %p173
    %p176 = scmp.ne.s32.totalorder %s159, %s175
    %p177 = scmp.eq.s32.totalorder %s17, 0
    %p178 = por %p176, %p177
    %p179 = scmp.le.s32.totalorder 1, %s11
    %p180 = scmp.lt.s32.totalorder %s11, 3
    %p181 = pnand %p179, %p180
    %p182 = pneg %p181
    // Predicated region
    $region9: #{tpu_custom_call.1} parent=5 // pred_check
      _
    $region10: #{tpu_custom_call.1} parent=5 // pred_check_branch
      %184 = sbr.rel (%p181) target = $region12
    $region11: #{tpu_custom_call.1} parent=5 // pred_region
      %s185 = ssub.s32 %s11, 1
      // Predicated region
      $region13: #{tpu_custom_call.1} parent=11 // pred_check
        %p186 = pneg %p75
      $region14: #{tpu_custom_call.1} parent=11 // pred_check_branch
        %188 = sbr.rel (%p186) target = $region16
      $region15: #{tpu_custom_call.1} parent=11 // pred_region
        %s189 = smul.u32 32, %s21
        %p190 = scmp.lt.s32.totalorder %s189, 31
        %s191 = scalar_select %p190, %s189, 31
        %s192 = smul.addr %s191, 8
        %s193 = scalar_lea.vmem %s1, %s192
        %s194 = smul.u32 32, %s21
      $region16: #{tpu_custom_call.1} parent=11 // pred_fallthru
        _
      // Predicated region
      $region17: #{tpu_custom_call.1} parent=11 // pred_check
        %p195 = pneg %p124
      $region18: #{tpu_custom_call.1} parent=11 // pred_check_branch
        %197 = sbr.rel (%p195) target = $region20
      $region19: #{tpu_custom_call.1} parent=11 // pred_region
        _
      $region20: #{tpu_custom_call.1} parent=11 // pred_fallthru
        _
      // Predicated region
      $region21: #{tpu_custom_call.1} parent=11 // pred_check
        %p198 = pneg %p145
      $region22: #{tpu_custom_call.1} parent=11 // pred_check_branch
        %200 = sbr.rel (%p198) target = $region24
      $region23: #{tpu_custom_call.1} parent=11 // pred_region
        _
      $region24: #{tpu_custom_call.1} parent=11 // pred_fallthru
        _
    $region12: #{tpu_custom_call.1} parent=5 // pred_fallthru
      _
    %p201 = scmp.lt.s32.totalorder %s11, 2
    // Predicated region
    $region25: #{tpu_custom_call.1} parent=5 // pred_check
      %p202 = pneg %p201
    $region26: #{tpu_custom_call.1} parent=5 // pred_check_branch
      %204 = sbr.rel (%p202) target = $region28
    $region27: #{tpu_custom_call.1} parent=5 // pred_region
      // Predicated region
      $region29: #{tpu_custom_call.1} parent=27 // pred_check
        %p205 = pneg %p43
      $region30: #{tpu_custom_call.1} parent=27 // pred_check_branch
        %207 = sbr.rel (%p205) target = $region32
      $region31: #{tpu_custom_call.1} parent=27 // pred_region
        %s208 = smul.u32 16, %s18
        %p209 = scmp.lt.s32.totalorder %s208, 31
        %s210 = scalar_select %p209, %s208, 31
        %s211 = smul.addr %s210, 8
        %s212 = scalar_lea.vmem %s0, %s211
        %s213 = smul.u32 16, %s18
      $region32: #{tpu_custom_call.1} parent=27 // pred_fallthru
        _
      // Predicated region
      $region33: #{tpu_custom_call.1} parent=27 // pred_check
        %p214 = pneg %p97
      $region34: #{tpu_custom_call.1} parent=27 // pred_check_branch
        %216 = sbr.rel (%p214) target = $region36
      $region35: #{tpu_custom_call.1} parent=27 // pred_region
        %s217 = smul.u32 16, %s18
        %s218 = smul.u32 2, %s19
        %p219 = scmp.lt.s32.totalorder %s217, 31
        %s220 = scalar_select %p219, %s217, 31
        %p221 = scmp.lt.s32.totalorder %s218, 1
        %s222 = scalar_select %p221, %s218, 1
        %s223 = smul.addr %s220, 2
        %s224 = sadd.s32 %s222, %s223
        %s225 = smul.addr %s224, 8
        %s226 = scalar_lea.vmem %s2, %s225
        %s227 = smul.u32 16, %s18
        %s228 = smul.u32 2, %s19
      $region36: #{tpu_custom_call.1} parent=27 // pred_fallthru
        _
    $region28: #{tpu_custom_call.1} parent=5 // pred_fallthru
      _
    %p229 = scmp.le.s32.totalorder 1, %s11
    %p230 = scmp.lt.s32.totalorder %s11, 3
    %p231 = pnand %p229, %p230
    %p232 = pneg %p231
    // Predicated region
    $region37: #{tpu_custom_call.1} parent=5 // pred_check
      _
    $region38: #{tpu_custom_call.1} parent=5 // pred_check_branch
      %234 = sbr.rel (%p231) target = $region40
    $region39: #{tpu_custom_call.1} parent=5 // pred_region
      %s235 = ssub.s32 %s11, 1
      %s236 = smul.u32 16, %s20
      %p237 = scmp.lt.s32.totalorder %s236, 31
      %s238 = scalar_select %p237, %s236, 31
      %s239 = smul.addr %s238, 8
      %s240 = scalar_lea.vmem %s0, %s239
      %p241 = pneg %p49
      %p242 = pneg %p46
      %s243 = smul.u32 32, %s21
      %p244 = scmp.lt.s32.totalorder %s243, 31
      %s245 = scalar_select %p244, %s243, 31
      %s246 = smul.addr %s245, 8
      %s247 = scalar_lea.vmem %s1, %s246
      %p248 = pneg %p75
      %p249 = pneg %p72
      %s250 = smul.u32 16, %s20
      %s251 = smul.u32 2, %s21
      %p252 = scmp.lt.s32.totalorder %s250, 31
      %s253 = scalar_select %p252, %s250, 31
      %p254 = scmp.lt.s32.totalorder %s251, 1
      %s255 = scalar_select %p254, %s251, 1
      %s256 = smul.addr %s253, 2
      %s257 = sadd.s32 %s255, %s256
      %s258 = smul.addr %s257, 8
      %s259 = scalar_lea.vmem %s2, %s258
      %p260 = pneg %p103
      %p261 = pneg %p100
      %p262 = pneg %p124
      %p263 = pneg %p121
      %p264 = pneg %p145
      %p265 = pneg %p142
      %p266 = pneg %p171
      %p267 = pneg %p168
      %s268 = smul.u32 16, %s20
      %p269 = scmp.lt.s32.totalorder %s268, 31
      %s270 = scalar_select %p269, %s268, 31
      %s271 = smul.addr %s270, 8
      %s272 = scalar_lea.vmem %s5, %s271
      %s273 = smul.u32 16, %s20
      %p274 = scmp.lt.s32.totalorder %s273, 31
      %s275 = scalar_select %p274, %s273, 31
      %s276 = smul.addr %s275, 8
      %s277 = scalar_lea.vmem %s0, %s276
      %s278 = smul.u32 16, %s20
      %s279 = smul.u32 32, %s21
      %p280 = scmp.lt.s32.totalorder %s279, 31
      %s281 = scalar_select %p280, %s279, 31
      %s282 = smul.addr %s281, 8
      %s283 = scalar_lea.vmem %s1, %s282
      %s284 = smul.u32 32, %s21
      %s285 = smul.u32 16, %s20
      %s286 = smul.u32 2, %s21
      %p287 = scmp.lt.s32.totalorder %s285, 31
      %s288 = scalar_select %p287, %s285, 31
      %p289 = scmp.lt.s32.totalorder %s286, 1
      %s290 = scalar_select %p289, %s286, 1
      %s291 = smul.addr %s288, 2
      %s292 = sadd.s32 %s290, %s291
      %s293 = smul.addr %s292, 8
      %s294 = scalar_lea.vmem %s2, %s293
      %s295 = smul.u32 16, %s20
      %s296 = smul.u32 2, %s21
      %s297 = smul.u32 16, %s20
      %p298 = scmp.lt.s32.totalorder %s297, 31
      %s299 = scalar_select %p298, %s297, 31
      %s300 = smul.addr %s299, 8
      %s301 = scalar_lea.vmem %s5, %s300
      %s302 = smul.u32 16, %s20
      %p303 = scmp.eq.s32.totalorder %s21, 0
      // Predicated region
      $region41: #{tpu_custom_call.1} parent=39 // pred_check
        %p304 = pneg %p303
      $region42: #{tpu_custom_call.1} parent=39 // pred_check_branch
        %306 = sbr.rel (%p304) target = $region44
      $region43: #{tpu_custom_call.1} parent=39 // pred_region
        %v307 = vld [vmem:[%s277] sm:$0xff]
        %v308 = vld [vmem:[%s277 + $0x8] sm:$0xff]
        %v309 = vld [vmem:[%s277 + $0x10] sm:$0xff]
        %v310 = vld [vmem:[%s277 + $0x18] sm:$0xff]
        %v311 = vld [vmem:[%s277 + $0x20] sm:$0xff]
        %v312 = vld [vmem:[%s277 + $0x28] sm:$0xff]
        %v313 = vld [vmem:[%s277 + $0x30] sm:$0xff]
        %v314 = vld [vmem:[%s277 + $0x38] sm:$0xff]
        %v315 = vld [vmem:[%s277 + $0x40] sm:$0xff]
        %v316 = vld [vmem:[%s277 + $0x48] sm:$0xff]
        %v317 = vld [vmem:[%s277 + $0x50] sm:$0xff]
        %v318 = vld [vmem:[%s277 + $0x58] sm:$0xff]
        %v319 = vld [vmem:[%s277 + $0x60] sm:$0xff]
        %v320 = vld [vmem:[%s277 + $0x68] sm:$0xff]
        %v321 = vld [vmem:[%s277 + $0x70] sm:$0xff]
        %v322 = vld [vmem:[%s277 + $0x78] sm:$0xff]
        %v323 = vld [vmem:[%s3] sm:$0xff]
        %v324 = vld [vmem:[%s3 + $0x8] sm:$0xff]
        %v325 = vld [vmem:[%s3 + $0x10] sm:$0xff]
        %v326 = vld [vmem:[%s3 + $0x18] sm:$0xff]
        %v327 = vld [vmem:[%s3 + $0x20] sm:$0xff]
        %v328 = vld [vmem:[%s3 + $0x28] sm:$0xff]
        %v329 = vld [vmem:[%s4] sm:$0x1]
        %v331 = vlaneseq
        %v332 = vshrl.u32 %v331, 7
        %v333 = vsub.s32 0, %v332
        %v334 = vrot.slane %v329, %v333
        %vm336 = vcmask 392192
        %v338 = vsel %vm336, %v307, 0
        %v341 = vsel %vm336, %v308, 0
        %v344 = vsel %vm336, %v309, 0
        %v347 = vsel %vm336, %v310, 0
        %v350 = vsel %vm336, %v311, 0
        %v353 = vsel %vm336, %v312, 0
        %v356 = vsel %vm336, %v313, 0
        %v359 = vsel %vm336, %v314, 0
        %v362 = vsel %vm336, %v315, 0
        %v365 = vsel %vm336, %v316, 0
        %v368 = vsel %vm336, %v317, 0
        %v371 = vsel %vm336, %v318, 0
        %v374 = vsel %vm336, %v319, 0
        %v377 = vsel %vm336, %v320, 0
        %v380 = vsel %vm336, %v321, 0
        %v383 = vsel %vm336, %v322, 0
        %385 = vmatprep.subr.mxu0 0.0
        %386 = vmatpush1.msra.mxu0 0.0
        %387 = vmatprep.subr.mxu0 0.0
        %388 = vmatpush1.msra.mxu0 0.0
        %389 = vmatprep.subr.mxu0 0.0
        %390 = vmatpush1.msra.mxu0 0.0
        %391 = vmatprep.subr.mxu0 0.0
        %392 = vmatpush1.msra.mxu0 0.0
        %393 = vmatprep.subr.mxu0 0.0
        %394 = vmatpush1.msra.mxu0 0.0
        %395 = vmatprep.subr.mxu0 0.0
        %396 = vmatpush1.msra.mxu0 0.0
        %397 = vmatprep.subr.mxu0 0.0
        %398 = vmatpush1.msra.mxu0 0.0
        %399 = vmatprep.subr.mxu0 0.0
        %400 = vmatpush1.msra.mxu0 0.0
        %401 = vmatprep.subr.mxu0 0.0
        %402 = vmatpush1.msra.mxu0 0.0
        %403 = vmatprep.subr.mxu0 0.0
        %404 = vmatpush1.msra.mxu0 0.0
        %405 = vmatprep.subr.mxu0 0.0
        %406 = vmatpush1.msra.mxu0 %v328
        %407 = vmatprep.subr.mxu0 0.0
        %408 = vmatpush1.msra.mxu0 %v327
        %409 = vmatprep.subr.mxu0 0.0
        %410 = vmatpush1.msra.mxu0 %v326
        %411 = vmatprep.subr.mxu0 0.0
        %412 = vmatpush1.msra.mxu0 %v325
        %413 = vmatprep.subr.mxu0 0.0
        %414 = vmatpush1.msra.mxu0 %v324
        %415 = vmatprep.subr.mxu0 0.0
        %416 = vmatpush1.msra.mxu0 %v323
        %417 = vmatprep.subr.mxu0 0.0
        %418 = vmatpush2.msra.mxu0 0.0
        %419 = vmatprep.subr.mxu0 0.0
        %420 = vmatpush2.msra.mxu0 0.0
        %421 = vmatprep.subr.mxu0 0.0
        %422 = vmatpush2.msra.mxu0 0.0
        %423 = vmatprep.subr.mxu0 0.0
        %424 = vmatpush2.msra.mxu0 0.0
        %425 = vmatprep.subr.mxu0 0.0
        %426 = vmatpush2.msra.mxu0 0.0
        %427 = vmatprep.subr.mxu0 0.0
        %428 = vmatpush2.msra.mxu0 0.0
        %429 = vmatprep.subr.mxu0 0.0
        %430 = vmatpush2.msra.mxu0 0.0
        %431 = vmatprep.subr.mxu0 0.0
        %432 = vmatpush2.msra.mxu0 0.0
        %433 = vmatprep.subr.mxu0 0.0
        %434 = vmatpush2.msra.mxu0 0.0
        %435 = vmatprep.subr.mxu0 0.0
        %436 = vmatpush2.msra.mxu0 0.0
        %437 = vmatprep.subr.mxu0 0.0
        %438 = vmatpush2.msra.mxu0 0.0
        %439 = vmatprep.subr.mxu0 0.0
        %440 = vmatpush2.msra.mxu0 0.0
        %441 = vmatprep.subr.mxu0 0.0
        %442 = vmatpush2.msra.mxu0 0.0
        %443 = vmatprep.subr.mxu0 0.0
        %444 = vmatpush2.msra.mxu0 0.0
        %445 = vmatprep.subr.mxu0 0.0
        %446 = vmatpush2.msra.mxu0 0.0
        %447 = vmatprep.subr.mxu0 0.0
        %448 = vmatpush2.msra.mxu0 0.0
        %449 = vmatprep.mubr.f32.mxu0 0.0
        %450 = vmatmul.mubr.f32.gmra.mxu0 %v338
        %v451 = vpop.f32.mrf.mxu0
        %v452 = vadd.f32 %v334, %v451
        %v453 = vpop.f32.mrf.mxu0
        %454 = vmatprep.mubr.f32.mxu0 0.0
        %455 = vmatmul.mubr.f32.gmra.mxu0 %v341
        %v456 = vpop.f32.mrf.mxu0
        %v457 = vadd.f32 %v334, %v456
        %v458 = vpop.f32.mrf.mxu0
        %459 = vmatprep.mubr.f32.mxu0 0.0
        %460 = vmatmul.mubr.f32.gmra.mxu0 %v344
        %v461 = vpop.f32.mrf.mxu0
        %v462 = vadd.f32 %v334, %v461
        %v463 = vpop.f32.mrf.mxu0
        %464 = vmatprep.mubr.f32.mxu0 0.0
        %465 = vmatmul.mubr.f32.gmra.mxu0 %v347
        %v466 = vpop.f32.mrf.mxu0
        %v467 = vadd.f32 %v334, %v466
        %v468 = vpop.f32.mrf.mxu0
        %469 = vmatprep.mubr.f32.mxu0 0.0
        %470 = vmatmul.mubr.f32.gmra.mxu0 %v350
        %v471 = vpop.f32.mrf.mxu0
        %v472 = vadd.f32 %v334, %v471
        %v473 = vpop.f32.mrf.mxu0
        %474 = vmatprep.mubr.f32.mxu0 0.0
        %475 = vmatmul.mubr.f32.gmra.mxu0 %v353
        %v476 = vpop.f32.mrf.mxu0
        %v477 = vadd.f32 %v334, %v476
        %v478 = vpop.f32.mrf.mxu0
        %479 = vmatprep.mubr.f32.mxu0 0.0
        %480 = vmatmul.mubr.f32.gmra.mxu0 %v356
        %v481 = vpop.f32.mrf.mxu0
        %v482 = vadd.f32 %v334, %v481
        %v483 = vpop.f32.mrf.mxu0
        %484 = vmatprep.mubr.f32.mxu0 0.0
        %485 = vmatmul.mubr.f32.gmra.mxu0 %v359
        %v486 = vpop.f32.mrf.mxu0
        %v487 = vadd.f32 %v334, %v486
        %v488 = vpop.f32.mrf.mxu0
        %489 = vmatprep.mubr.f32.mxu0 0.0
        %490 = vmatmul.mubr.f32.gmra.mxu0 %v362
        %v491 = vpop.f32.mrf.mxu0
        %v492 = vadd.f32 %v334, %v491
        %v493 = vpop.f32.mrf.mxu0
        %494 = vmatprep.mubr.f32.mxu0 0.0
        %495 = vmatmul.mubr.f32.gmra.mxu0 %v365
        %v496 = vpop.f32.mrf.mxu0
        %v497 = vadd.f32 %v334, %v496
        %v498 = vpop.f32.mrf.mxu0
        %499 = vmatprep.mubr.f32.mxu0 0.0
        %500 = vmatmul.mubr.f32.gmra.mxu0 %v368
        %v501 = vpop.f32.mrf.mxu0
        %v502 = vadd.f32 %v334, %v501
        %v503 = vpop.f32.mrf.mxu0
        %504 = vmatprep.mubr.f32.mxu0 0.0
        %505 = vmatmul.mubr.f32.gmra.mxu0 %v371
        %v506 = vpop.f32.mrf.mxu0
        %v507 = vadd.f32 %v334, %v506
        %v508 = vpop.f32.mrf.mxu0
        %509 = vmatprep.mubr.f32.mxu0 0.0
        %510 = vmatmul.mubr.f32.gmra.mxu0 %v374
        %v511 = vpop.f32.mrf.mxu0
        %v512 = vadd.f32 %v334, %v511
        %v513 = vpop.f32.mrf.mxu0
        %514 = vmatprep.mubr.f32.mxu0 0.0
        %515 = vmatmul.mubr.f32.gmra.mxu0 %v377
        %v516 = vpop.f32.mrf.mxu0
        %v517 = vadd.f32 %v334, %v516
        %v518 = vpop.f32.mrf.mxu0
        %519 = vmatprep.mubr.f32.mxu0 0.0
        %520 = vmatmul.mubr.f32.gmra.mxu0 %v380
        %v521 = vpop.f32.mrf.mxu0
        %v522 = vadd.f32 %v334, %v521
        %v523 = vpop.f32.mrf.mxu0
        %524 = vmatprep.mubr.f32.mxu0 0.0
        %525 = vmatmul.mubr.f32.gmra.mxu0 %v383
        %v526 = vpop.f32.mrf.mxu0
        %v527 = vadd.f32 %v334, %v526
        %v528 = vpop.f32.mrf.mxu0
        %529 = vdwg.mxu0
        %vm530 = vcmask 261120
        %531 = vst.msk [vmem:[%s301] sm:$0xff] %vm530, %v452
        %532 = vst.msk [vmem:[%s301 + $0x8] sm:$0xff] %vm530, %v457
        %533 = vst.msk [vmem:[%s301 + $0x10] sm:$0xff] %vm530, %v462
        %534 = vst.msk [vmem:[%s301 + $0x18] sm:$0xff] %vm530, %v467
        %535 = vst.msk [vmem:[%s301 + $0x20] sm:$0xff] %vm530, %v472
        %536 = vst.msk [vmem:[%s301 + $0x28] sm:$0xff] %vm530, %v477
        %537 = vst.msk [vmem:[%s301 + $0x30] sm:$0xff] %vm530, %v482
        %538 = vst.msk [vmem:[%s301 + $0x38] sm:$0xff] %vm530, %v487
        %539 = vst.msk [vmem:[%s301 + $0x40] sm:$0xff] %vm530, %v492
        %540 = vst.msk [vmem:[%s301 + $0x48] sm:$0xff] %vm530, %v497
        %541 = vst.msk [vmem:[%s301 + $0x50] sm:$0xff] %vm530, %v502
        %542 = vst.msk [vmem:[%s301 + $0x58] sm:$0xff] %vm530, %v507
        %543 = vst.msk [vmem:[%s301 + $0x60] sm:$0xff] %vm530, %v512
        %544 = vst.msk [vmem:[%s301 + $0x68] sm:$0xff] %vm530, %v517
        %545 = vst.msk [vmem:[%s301 + $0x70] sm:$0xff] %vm530, %v522
        %546 = vst.msk [vmem:[%s301 + $0x78] sm:$0xff] %vm530, %v527
      $region44: #{tpu_custom_call.1} parent=39 // pred_fallthru
        _
      %v547 = vld [vmem:[%s294] sm:$0xff]
      %v548 = vld [vmem:[%s294 + $0x8] sm:$0xff]
      %v549 = vld [vmem:[%s294 + $0x10] sm:$0xff]
      %v550 = vld [vmem:[%s294 + $0x18] sm:$0xff]
      %v551 = vld [vmem:[%s294 + $0x20] sm:$0xff]
      %v552 = vld [vmem:[%s294 + $0x28] sm:$0xff]
      %v553 = vld [vmem:[%s294 + $0x30] sm:$0xff]
      %v554 = vld [vmem:[%s294 + $0x38] sm:$0xff]
      %v555 = vld [vmem:[%s294 + $0x40] sm:$0xff]
      %v556 = vld [vmem:[%s294 + $0x48] sm:$0xff]
      %v557 = vld [vmem:[%s294 + $0x50] sm:$0xff]
      %v558 = vld [vmem:[%s294 + $0x58] sm:$0xff]
      %v559 = vld [vmem:[%s294 + $0x60] sm:$0xff]
      %v560 = vld [vmem:[%s294 + $0x68] sm:$0xff]
      %v561 = vld [vmem:[%s294 + $0x70] sm:$0xff]
      %v562 = vld [vmem:[%s294 + $0x78] sm:$0xff]
      %v563 = vld [vmem:[%s294 + $0x80] sm:$0xff]
      %v564 = vld [vmem:[%s294 + $0x88] sm:$0xff]
      %v565 = vld [vmem:[%s294 + $0x90] sm:$0xff]
      %v566 = vld [vmem:[%s294 + $0x98] sm:$0xff]
      %v567 = vld [vmem:[%s294 + $0xa0] sm:$0xff]
      %v568 = vld [vmem:[%s294 + $0xa8] sm:$0xff]
      %v569 = vld [vmem:[%s294 + $0xb0] sm:$0xff]
      %v570 = vld [vmem:[%s294 + $0xb8] sm:$0xff]
      %v571 = vld [vmem:[%s294 + $0xc0] sm:$0xff]
      %v572 = vld [vmem:[%s294 + $0xc8] sm:$0xff]
      %v573 = vld [vmem:[%s294 + $0xd0] sm:$0xff]
      %v574 = vld [vmem:[%s294 + $0xd8] sm:$0xff]
      %v575 = vld [vmem:[%s294 + $0xe0] sm:$0xff]
      %v576 = vld [vmem:[%s294 + $0xe8] sm:$0xff]
      %v577 = vld [vmem:[%s294 + $0xf0] sm:$0xff]
      %v578 = vld [vmem:[%s294 + $0xf8] sm:$0xff]
      %v579 = vmul.f32 %v547, %v547
      %v580 = vmul.f32 %v548, %v548
      %v581 = vmul.f32 %v549, %v549
      %v582 = vmul.f32 %v550, %v550
      %v583 = vmul.f32 %v551, %v551
      %v584 = vmul.f32 %v552, %v552
      %v585 = vmul.f32 %v553, %v553
      %v586 = vmul.f32 %v554, %v554
      %v587 = vmul.f32 %v555, %v555
      %v588 = vmul.f32 %v556, %v556
      %v589 = vmul.f32 %v557, %v557
      %v590 = vmul.f32 %v558, %v558
      %v591 = vmul.f32 %v559, %v559
      %v592 = vmul.f32 %v560, %v560
      %v593 = vmul.f32 %v561, %v561
      %v594 = vmul.f32 %v562, %v562
      %v595 = vmul.f32 %v563, %v563
      %v596 = vmul.f32 %v564, %v564
      %v597 = vmul.f32 %v565, %v565
      %v598 = vmul.f32 %v566, %v566
      %v599 = vmul.f32 %v567, %v567
      %v600 = vmul.f32 %v568, %v568
      %v601 = vmul.f32 %v569, %v569
      %v602 = vmul.f32 %v570, %v570
      %v603 = vmul.f32 %v571, %v571
      %v604 = vmul.f32 %v572, %v572
      %v605 = vmul.f32 %v573, %v573
      %v606 = vmul.f32 %v574, %v574
      %v607 = vmul.f32 %v575, %v575
      %v608 = vmul.f32 %v576, %v576
      %v609 = vmul.f32 %v577, %v577
      %v610 = vmul.f32 %v578, %v578
      %v611 = vld [vmem:[%s301] sm:$0xff]
      %v612 = vld [vmem:[%s301 + $0x8] sm:$0xff]
      %v613 = vld [vmem:[%s301 + $0x10] sm:$0xff]
      %v614 = vld [vmem:[%s301 + $0x18] sm:$0xff]
      %v615 = vld [vmem:[%s301 + $0x20] sm:$0xff]
      %v616 = vld [vmem:[%s301 + $0x28] sm:$0xff]
      %v617 = vld [vmem:[%s301 + $0x30] sm:$0xff]
      %v618 = vld [vmem:[%s301 + $0x38] sm:$0xff]
      %v619 = vld [vmem:[%s301 + $0x40] sm:$0xff]
      %v620 = vld [vmem:[%s301 + $0x48] sm:$0xff]
      %v621 = vld [vmem:[%s301 + $0x50] sm:$0xff]
      %v622 = vld [vmem:[%s301 + $0x58] sm:$0xff]
      %v623 = vld [vmem:[%s301 + $0x60] sm:$0xff]
      %v624 = vld [vmem:[%s301 + $0x68] sm:$0xff]
      %v625 = vld [vmem:[%s301 + $0x70] sm:$0xff]
      %v626 = vld [vmem:[%s301 + $0x78] sm:$0xff]
      %v627 = vld [vmem:[%s283] sm:$0xff]
      %v628 = vld [vmem:[%s283 + $0x8] sm:$0xff]
      %v629 = vld [vmem:[%s283 + $0x10] sm:$0xff]
      %v630 = vld [vmem:[%s283 + $0x18] sm:$0xff]
      %v631 = vld [vmem:[%s283 + $0x20] sm:$0xff]
      %v632 = vld [vmem:[%s283 + $0x28] sm:$0xff]
      %v633 = vld [vmem:[%s283 + $0x30] sm:$0xff]
      %v634 = vld [vmem:[%s283 + $0x38] sm:$0xff]
      %v635 = vld [vmem:[%s283 + $0x40] sm:$0xff]
      %v636 = vld [vmem:[%s283 + $0x48] sm:$0xff]
      %v637 = vld [vmem:[%s283 + $0x50] sm:$0xff]
      %v638 = vld [vmem:[%s283 + $0x58] sm:$0xff]
      %v639 = vld [vmem:[%s283 + $0x60] sm:$0xff]
      %v640 = vld [vmem:[%s283 + $0x68] sm:$0xff]
      %v641 = vld [vmem:[%s283 + $0x70] sm:$0xff]
      %v642 = vld [vmem:[%s283 + $0x78] sm:$0xff]
      %v643 = vld [vmem:[%s283 + $0x80] sm:$0xff]
      %v644 = vld [vmem:[%s283 + $0x88] sm:$0xff]
      %v645 = vld [vmem:[%s283 + $0x90] sm:$0xff]
      %v646 = vld [vmem:[%s283 + $0x98] sm:$0xff]
      %v647 = vld [vmem:[%s283 + $0xa0] sm:$0xff]
      %v648 = vld [vmem:[%s283 + $0xa8] sm:$0xff]
      %v649 = vld [vmem:[%s283 + $0xb0] sm:$0xff]
      %v650 = vld [vmem:[%s283 + $0xb8] sm:$0xff]
      %v651 = vld [vmem:[%s283 + $0xc0] sm:$0xff]
      %v652 = vld [vmem:[%s283 + $0xc8] sm:$0xff]
      %v653 = vld [vmem:[%s283 + $0xd0] sm:$0xff]
      %v654 = vld [vmem:[%s283 + $0xd8] sm:$0xff]
      %v655 = vld [vmem:[%s283 + $0xe0] sm:$0xff]
      %v656 = vld [vmem:[%s283 + $0xe8] sm:$0xff]
      %v657 = vld [vmem:[%s283 + $0xf0] sm:$0xff]
      %v658 = vld [vmem:[%s283 + $0xf8] sm:$0xff]
      %659 = vmatprep.subr.mxu0 0.0
      %660 = vmatpush1.msra.mxu0 %v642
      %661 = vmatprep.subr.mxu0 0.0
      %662 = vmatpush1.msra.mxu0 %v641
      %663 = vmatprep.subr.mxu0 0.0
      %664 = vmatpush1.msra.mxu0 %v640
      %665 = vmatprep.subr.mxu0 0.0
      %666 = vmatpush1.msra.mxu0 %v639
      %667 = vmatprep.subr.mxu0 0.0
      %668 = vmatpush1.msra.mxu0 %v638
      %669 = vmatprep.subr.mxu0 0.0
      %670 = vmatpush1.msra.mxu0 %v637
      %671 = vmatprep.subr.mxu0 0.0
      %672 = vmatpush1.msra.mxu0 %v636
      %673 = vmatprep.subr.mxu0 0.0
      %674 = vmatpush1.msra.mxu0 %v635
      %675 = vmatprep.subr.mxu0 0.0
      %676 = vmatpush1.msra.mxu0 %v634
      %677 = vmatprep.subr.mxu0 0.0
      %678 = vmatpush1.msra.mxu0 %v633
      %679 = vmatprep.subr.mxu0 0.0
      %680 = vmatpush1.msra.mxu0 %v632
      %681 = vmatprep.subr.mxu0 0.0
      %682 = vmatpush1.msra.mxu0 %v631
      %683 = vmatprep.subr.mxu0 0.0
      %684 = vmatpush1.msra.mxu0 %v630
      %685 = vmatprep.subr.mxu0 0.0
      %686 = vmatpush1.msra.mxu0 %v629
      %687 = vmatprep.subr.mxu0 0.0
      %688 = vmatpush1.msra.mxu0 %v628
      %689 = vmatprep.subr.mxu0 0.0
      %690 = vmatpush1.msra.mxu0 %v627
      %691 = vmatprep.subr.mxu0 0.0
      %692 = vmatpush2.msra.mxu0 %v658
      %693 = vmatprep.subr.mxu0 0.0
      %694 = vmatpush2.msra.mxu0 %v657
      %695 = vmatprep.subr.mxu0 0.0
      %696 = vmatpush2.msra.mxu0 %v656
      %697 = vmatprep.subr.mxu0 0.0
      %698 = vmatpush2.msra.mxu0 %v655
      %699 = vmatprep.subr.mxu0 0.0
      %700 = vmatpush2.msra.mxu0 %v654
      %701 = vmatprep.subr.mxu0 0.0
      %702 = vmatpush2.msra.mxu0 %v653
      %703 = vmatprep.subr.mxu0 0.0
      %704 = vmatpush2.msra.mxu0 %v652
      %705 = vmatprep.subr.mxu0 0.0
      %706 = vmatpush2.msra.mxu0 %v651
      %707 = vmatprep.subr.mxu0 0.0
      %708 = vmatpush2.msra.mxu0 %v650
      %709 = vmatprep.subr.mxu0 0.0
      %710 = vmatpush2.msra.mxu0 %v649
      %711 = vmatprep.subr.mxu0 0.0
      %712 = vmatpush2.msra.mxu0 %v648
      %713 = vmatprep.subr.mxu0 0.0
      %714 = vmatpush2.msra.mxu0 %v647
      %715 = vmatprep.subr.mxu0 0.0
      %716 = vmatpush2.msra.mxu0 %v646
      %717 = vmatprep.subr.mxu0 0.0
      %718 = vmatpush2.msra.mxu0 %v645
      %719 = vmatprep.subr.mxu0 0.0
      %720 = vmatpush2.msra.mxu0 %v644
      %721 = vmatprep.subr.mxu0 0.0
      %722 = vmatpush2.msra.mxu0 %v643
      %723 = vmatprep.mubr.f32.mxu0 %v580
      %724 = vmatmul.mubr.f32.gmra.mxu0 %v579
      %v725 = vpop.f32.mrf.mxu0
      %v726 = vadd.f32 0.0, %v725
      %v727 = vpop.f32.mrf.mxu0
      %728 = vmatprep.mubr.f32.mxu0 %v582
      %729 = vmatmul.mubr.f32.gmra.mxu0 %v581
      %v730 = vpop.f32.mrf.mxu0
      %v731 = vadd.f32 0.0, %v730
      %v732 = vpop.f32.mrf.mxu0
      %733 = vmatprep.mubr.f32.mxu0 %v584
      %734 = vmatmul.mubr.f32.gmra.mxu0 %v583
      %v735 = vpop.f32.mrf.mxu0
      %v736 = vadd.f32 0.0, %v735
      %v737 = vpop.f32.mrf.mxu0
      %738 = vmatprep.mubr.f32.mxu0 %v586
      %739 = vmatmul.mubr.f32.gmra.mxu0 %v585
      %v740 = vpop.f32.mrf.mxu0
      %v741 = vadd.f32 0.0, %v740
      %v742 = vpop.f32.mrf.mxu0
      %743 = vmatprep.mubr.f32.mxu0 %v588
      %744 = vmatmul.mubr.f32.gmra.mxu0 %v587
      %v745 = vpop.f32.mrf.mxu0
      %v746 = vadd.f32 0.0, %v745
      %v747 = vpop.f32.mrf.mxu0
      %748 = vmatprep.mubr.f32.mxu0 %v590
      %749 = vmatmul.mubr.f32.gmra.mxu0 %v589
      %v750 = vpop.f32.mrf.mxu0
      %v751 = vadd.f32 0.0, %v750
      %v752 = vpop.f32.mrf.mxu0
      %753 = vmatprep.mubr.f32.mxu0 %v592
      %754 = vmatmul.mubr.f32.gmra.mxu0 %v591
      %v755 = vpop.f32.mrf.mxu0
      %v756 = vadd.f32 0.0, %v755
      %v757 = vpop.f32.mrf.mxu0
      %758 = vmatprep.mubr.f32.mxu0 %v594
      %759 = vmatmul.mubr.f32.gmra.mxu0 %v593
      %v760 = vpop.f32.mrf.mxu0
      %v761 = vadd.f32 0.0, %v760
      %v762 = vpop.f32.mrf.mxu0
      %763 = vmatprep.mubr.f32.mxu0 %v596
      %764 = vmatmul.mubr.f32.gmra.mxu0 %v595
      %v765 = vpop.f32.mrf.mxu0
      %v766 = vadd.f32 0.0, %v765
      %v767 = vpop.f32.mrf.mxu0
      %768 = vmatprep.mubr.f32.mxu0 %v598
      %769 = vmatmul.mubr.f32.gmra.mxu0 %v597
      %v770 = vpop.f32.mrf.mxu0
      %v771 = vadd.f32 0.0, %v770
      %v772 = vpop.f32.mrf.mxu0
      %773 = vmatprep.mubr.f32.mxu0 %v600
      %774 = vmatmul.mubr.f32.gmra.mxu0 %v599
      %v775 = vpop.f32.mrf.mxu0
      %v776 = vadd.f32 0.0, %v775
      %v777 = vpop.f32.mrf.mxu0
      %778 = vmatprep.mubr.f32.mxu0 %v602
      %779 = vmatmul.mubr.f32.gmra.mxu0 %v601
      %v780 = vpop.f32.mrf.mxu0
      %v781 = vadd.f32 0.0, %v780
      %v782 = vpop.f32.mrf.mxu0
      %783 = vmatprep.mubr.f32.mxu0 %v604
      %784 = vmatmul.mubr.f32.gmra.mxu0 %v603
      %v785 = vpop.f32.mrf.mxu0
      %v786 = vadd.f32 0.0, %v785
      %v787 = vpop.f32.mrf.mxu0
      %788 = vmatprep.mubr.f32.mxu0 %v606
      %789 = vmatmul.mubr.f32.gmra.mxu0 %v605
      %v790 = vpop.f32.mrf.mxu0
      %v791 = vadd.f32 0.0, %v790
      %v792 = vpop.f32.mrf.mxu0
      %793 = vmatprep.mubr.f32.mxu0 %v608
      %794 = vmatmul.mubr.f32.gmra.mxu0 %v607
      %v795 = vpop.f32.mrf.mxu0
      %v796 = vadd.f32 0.0, %v795
      %v797 = vpop.f32.mrf.mxu0
      %798 = vmatprep.mubr.f32.mxu0 %v610
      %799 = vmatmul.mubr.f32.gmra.mxu0 %v609
      %v800 = vpop.f32.mrf.mxu0
      %v801 = vadd.f32 0.0, %v800
      %v802 = vpop.f32.mrf.mxu0
      %803 = vdwg.mxu0
      %v804 = vadd.f32 %v611, %v726
      %v805 = vadd.f32 %v612, %v731
      %v806 = vadd.f32 %v613, %v736
      %v807 = vadd.f32 %v614, %v741
      %v808 = vadd.f32 %v615, %v746
      %v809 = vadd.f32 %v616, %v751
      %v810 = vadd.f32 %v617, %v756
      %v811 = vadd.f32 %v618, %v761
      %v812 = vadd.f32 %v619, %v766
      %v813 = vadd.f32 %v620, %v771
      %v814 = vadd.f32 %v621, %v776
      %v815 = vadd.f32 %v622, %v781
      %v816 = vadd.f32 %v623, %v786
      %v817 = vadd.f32 %v624, %v791
      %v818 = vadd.f32 %v625, %v796
      %v819 = vadd.f32 %v626, %v801
      %vm820 = vcmask 261120
      %821 = vst.msk [vmem:[%s301] sm:$0xff] %vm820, %v804
      %822 = vst.msk [vmem:[%s301 + $0x8] sm:$0xff] %vm820, %v805
      %823 = vst.msk [vmem:[%s301 + $0x10] sm:$0xff] %vm820, %v806
      %824 = vst.msk [vmem:[%s301 + $0x18] sm:$0xff] %vm820, %v807
      %825 = vst.msk [vmem:[%s301 + $0x20] sm:$0xff] %vm820, %v808
      %826 = vst.msk [vmem:[%s301 + $0x28] sm:$0xff] %vm820, %v809
      %827 = vst.msk [vmem:[%s301 + $0x30] sm:$0xff] %vm820, %v810
      %828 = vst.msk [vmem:[%s301 + $0x38] sm:$0xff] %vm820, %v811
      %829 = vst.msk [vmem:[%s301 + $0x40] sm:$0xff] %vm820, %v812
      %830 = vst.msk [vmem:[%s301 + $0x48] sm:$0xff] %vm820, %v813
      %831 = vst.msk [vmem:[%s301 + $0x50] sm:$0xff] %vm820, %v814
      %832 = vst.msk [vmem:[%s301 + $0x58] sm:$0xff] %vm820, %v815
      %833 = vst.msk [vmem:[%s301 + $0x60] sm:$0xff] %vm820, %v816
      %834 = vst.msk [vmem:[%s301 + $0x68] sm:$0xff] %vm820, %v817
      %835 = vst.msk [vmem:[%s301 + $0x70] sm:$0xff] %vm820, %v818
      %836 = vst.msk [vmem:[%s301 + $0x78] sm:$0xff] %vm820, %v819
      %s837 = smul.u32 16, %s20
      %p838 = scmp.lt.s32.totalorder %s837, 31
      %s839 = scalar_select %p838, %s837, 31
      %s840 = smul.addr %s839, 8
      %s841 = scalar_lea.vmem %s5, %s840
      // Predicated region
      $region45: #{tpu_custom_call.1} parent=39 // pred_check
        %p842 = pneg %p168
      $region46: #{tpu_custom_call.1} parent=39 // pred_check_branch
        %844 = sbr.rel (%p842) target = $region48
      $region47: #{tpu_custom_call.1} parent=39 // pred_region
        %s845 = smul.u32 16, %s20
      $region48: #{tpu_custom_call.1} parent=39 // pred_fallthru
        _
    $region40: #{tpu_custom_call.1} parent=5 // pred_fallthru
      _
    %p846 = scmp.le.s32.totalorder 2, %s11
    // Predicated region
    $region49: #{tpu_custom_call.1} parent=5 // pred_check
      %p847 = pneg %p846
    $region50: #{tpu_custom_call.1} parent=5 // pred_check_branch
      %849 = sbr.rel (%p847) target = $region52
    $region51: #{tpu_custom_call.1} parent=5 // pred_region
      %s850 = ssub.s32 %s11, 2
      // Predicated region
      $region53: #{tpu_custom_call.1} parent=51 // pred_check
        %p851 = pneg %p174
      $region54: #{tpu_custom_call.1} parent=51 // pred_check_branch
        %853 = sbr.rel (%p851) target = $region56
      $region55: #{tpu_custom_call.1} parent=51 // pred_region
        %s854 = smul.u32 16, %s22
        %p855 = scmp.lt.s32.totalorder %s854, 31
        %s856 = scalar_select %p855, %s854, 31
        %s857 = smul.addr %s856, 8
        %s858 = scalar_lea.vmem %s5, %s857
      $region56: #{tpu_custom_call.1} parent=51 // pred_fallthru
        _
    $region52: #{tpu_custom_call.1} parent=5 // pred_fallthru
      _
  $region6: #{tpu_custom_call.1} parent=0 // loop_footer
    %s15 = sadd.s32 1, %s11
  $region7: #{tpu_custom_call.1} parent=0 // loop_footer_branch
    %10 = sbr.rel target = $region3
  $region8: #{tpu_custom_call.1} parent=0 // loop_exit
    _

</llo_original>
